<compile_context>
chip_gen: v7x
topology: tpu7x:2x2x1
jax: 0.10.0
libtpu: 0.0.40
codegen_flags: <defaults>
</compile_context>

<pallas_src>
import functools

import jax
import jax.numpy as jnp
from jax import lax
from jax.experimental import pallas as pl
from jax.experimental.pallas import tpu as pltpu

# PyTorch PairwiseDistance default eps (added to the difference before norm).
_EPS = 1e-6

_LANE = 128
_MAX_TILE_ROWS = 1024
_TARGET_TILE_BYTES = 2 * 1024 * 1024   # ~2 MiB per pipeline buffer per input


def _round_up(x, m):
    return ((x + m - 1) // m) * m


def _pick_tile_rows(n_rows, n_cols, itemsize):
    """Row tile: multiple of 128, sized so 2 inputs x 2 buffers fit VMEM."""
    tm = _TARGET_TILE_BYTES // max(1, n_cols * itemsize)
    tm = max(_LANE, min(_MAX_TILE_ROWS, (tm // _LANE) * _LANE))
    # Never larger than the (row-padded) problem itself.
    tm = min(tm, _round_up(n_rows, _LANE))
    return tm


def _euclid_none_kernel(x_ref, y_ref, o_ref):
    """Per-row L2 distance for one (TM, D) tile -> lane-dense (1, TM) output."""
    d = x_ref[...].astype(jnp.float32) - y_ref[...].astype(jnp.float32) + _EPS
    dist = jnp.sqrt(jnp.sum(d * d, axis=-1))            # (TM,)
    o_ref[...] = dist[None, :].astype(o_ref.dtype)      # (1, TM) lane-dense store


def _euclid_reduce_kernel(x_ref, y_ref, o_ref, *, mean, n_rows, tile_rows):
    """Grid reduction: accumulate per-tile sum of row distances into SMEM."""
    i = pl.program_id(0)

    @pl.when(i == 0)
    def _init():
        o_ref[0, 0] = jnp.float32(0.0)

    d = x_ref[...].astype(jnp.float32) - y_ref[...].astype(jnp.float32) + _EPS
    # Mask rows past the true row count (zero padding added by the wrapper),
    # otherwise the eps-offset of padded rows would leak into the sum.
    row = i * tile_rows + lax.broadcasted_iota(jnp.int32, d.shape, 0)
    d = jnp.where(row < n_rows, d, 0.0)
    dist = jnp.sqrt(jnp.sum(d * d, axis=-1, keepdims=True))   # (TM, 1)
    o_ref[0, 0] += jnp.sum(dist)

    if mean:
        @pl.when(i == pl.num_programs(0) - 1)
        def _finalize():
            o_ref[0, 0] = o_ref[0, 0] * jnp.float32(1.0 / n_rows)


def euclidean_distance_loss(output, target, reduction: str = "mean"):
    """JAX/Pallas equivalent of EuclideanDistanceLoss.forward."""
    if reduction not in ("mean", "sum", "none"):
        raise ValueError(f"Reduction value, '{reduction}' not accepted.")
    if output.shape != target.shape:
        raise ValueError("output and target must have the same shape")
    if output.ndim != 2:
        raise ValueError("expected 2D (batch, flattened-keypoints) inputs")

    n, dim = output.shape
    in_dtype = output.dtype
    itemsize = output.dtype.itemsize
    tm = _pick_tile_rows(n, dim, itemsize)
    n_pad = _round_up(n, tm)
    if n_pad != n:
        # Zero-pad the ragged final tile; padded rows are masked / sliced off.
        output = jnp.pad(output, ((0, n_pad - n), (0, 0)))
        target = jnp.pad(target, ((0, n_pad - n), (0, 0)))

    grid = (n_pad // tm,)
    in_specs = [
        pl.BlockSpec((tm, dim), lambda i: (i, 0)),
        pl.BlockSpec((tm, dim), lambda i: (i, 0)),
    ]
    cost = pl.CostEstimate(
        flops=3 * n * dim,                               # sub, mul, add-reduce
        transcendentals=n,                               # sqrt per row
        bytes_accessed=2 * n * dim * itemsize + n * itemsize,
    )

    if reduction == "none":
        out = pl.pallas_call(
            _euclid_none_kernel,
            out_shape=jax.ShapeDtypeStruct((1, n_pad), in_dtype),
            grid=grid,
            in_specs=in_specs,
            out_specs=pl.BlockSpec((1, tm), lambda i: (0, i)),
            compiler_params=pltpu.CompilerParams(
                dimension_semantics=("parallel",)),
            cost_estimate=cost,
        )(output, target)
        return out[0, :n]

    kernel = functools.partial(
        _euclid_reduce_kernel,
        mean=(reduction == "mean"), n_rows=n, tile_rows=tm)
    out = pl.pallas_call(
        kernel,
        out_shape=jax.ShapeDtypeStruct((1, 1), jnp.float32),
        grid=grid,
        in_specs=in_specs,
        out_specs=pl.BlockSpec(memory_space=pltpu.MemorySpace.SMEM),
        compiler_params=pltpu.CompilerParams(
            dimension_semantics=("arbitrary",)),
        cost_estimate=cost,
    )(output, target)
    return out[0, 0].astype(in_dtype)


def _reference(output, target, reduction):
    d = output.astype(jnp.float32) - target.astype(jnp.float32) + _EPS
    dist = jnp.sqrt(jnp.sum(d * d, axis=-1))
    if reduction == "mean":
        return jnp.mean(dist)
    if reduction == "sum":
        return jnp.sum(dist)
    return dist


if __name__ == "__main__":
    key = jax.random.PRNGKey(0)

    ok = True
    # (N, D): small module-consistent case (8 samples, 16 landmarks * (x, y))
    # plus a multi-tile ragged case exercising the grid, padding and masking.
    for n, d in ((8, 32), (1500, 48)):
        k1, k2 = jax.random.split(jax.random.fold_in(key, n))
        out = jax.random.normal(k1, (n, d), dtype=jnp.float32)
        tgt = jax.random.normal(k2, (n, d), dtype=jnp.float32)
        for red in ("mean", "sum", "none"):
            got = jax.block_until_ready(euclidean_distance_loss(out, tgt, red))
            want = _reference(out, tgt, red)
            if not jnp.allclose(got, want, rtol=1e-5, atol=1e-5):
                ok = False
                print(f"MISMATCH n={n} d={d} reduction={red}: {got} vs {want}")

    if ok:
        print("KERNEL_OK")
</pallas_src>

<mosaic_0001>
module attributes {stable_mosaic.version = 11 : i64} {
  func.func @_euclid_reduce_kernel(%arg0: i32, %arg1: memref<128x32xf32, #tpu.memory_space<vmem>>, %arg2: memref<128x32xf32, #tpu.memory_space<vmem>>, %arg3: memref<1x1xf32, #tpu.memory_space<smem>>) attributes {dimension_semantics = [#tpu.dimension_semantics<arbitrary>], iteration_bounds = array<i64: 1>, scalar_prefetch = 0 : i64, scratch_operands = 0 : i64, tpu.core_type = #tpu.core_type<tc>, window_params = [{transform_indices = @transform_0, window_bounds = array<i64: 128, 32>}, {transform_indices = @transform_1, window_bounds = array<i64: 128, 32>}, {transform_indices = @transform_2, window_bounds = array<i64: 1, 1>}]} {
    %c0_i32 = arith.constant 0 : i32
    %0 = arith.cmpi eq, %arg0, %c0_i32 : i32
    %1 = arith.extui %0 : i1 to i32
    %c0_i32_0 = arith.constant 0 : i32
    %2 = arith.cmpi ne, %1, %c0_i32_0 : i32
    scf.if %2 {
      %cst_13 = arith.constant 0.000000e+00 : f32
      %c0_14 = arith.constant 0 : index
      %c0_15 = arith.constant 0 : index
      %30 = memref.load %arg3[%c0_14, %c0_15] : memref<1x1xf32, #tpu.memory_space<smem>>
      memref.store %cst_13, %arg3[%c0_14, %c0_15] : memref<1x1xf32, #tpu.memory_space<smem>>
    } else {
    }
    %c0 = arith.constant 0 : index
    %c0_1 = arith.constant 0 : index
    %3 = vector.load %arg1[%c0, %c0_1] : memref<128x32xf32, #tpu.memory_space<vmem>>, vector<128x32xf32>
    %c0_2 = arith.constant 0 : index
    %c0_3 = arith.constant 0 : index
    %4 = vector.load %arg2[%c0_2, %c0_3] : memref<128x32xf32, #tpu.memory_space<vmem>>, vector<128x32xf32>
    %5 = arith.subf %3, %4 : vector<128x32xf32>
    %cst = arith.constant 9.99999997E-7 : f32
    %6 = vector.broadcast %cst : f32 to vector<128x32xf32>
    %7 = arith.addf %5, %6 : vector<128x32xf32>
    %c128_i32 = arith.constant 128 : i32
    %8 = arith.muli %arg0, %c128_i32 : i32
    %9 = tpu.iota {dimensions = array<i32: 0>} : vector<128x32xi32>
    %10 = vector.broadcast %8 : i32 to vector<128x32xi32>
    %11 = arith.addi %10, %9 : vector<128x32xi32>
    %c8_i32 = arith.constant 8 : i32
    %12 = vector.broadcast %c8_i32 : i32 to vector<128x32xi32>
    %13 = arith.cmpi slt, %11, %12 : vector<128x32xi32>
    %cst_4 = arith.constant 0.000000e+00 : f32
    %14 = vector.broadcast %cst_4 : f32 to vector<128x32xf32>
    %15 = arith.select %13, %7, %14 : vector<128x32xi1>, vector<128x32xf32>
    %16 = arith.mulf %15, %15 : vector<128x32xf32>
    %cst_5 = arith.constant dense<0.000000e+00> : vector<128xf32>
    %17 = vector.multi_reduction <add>, %16, %cst_5 [1] : vector<128x32xf32> to vector<128xf32>
    %18 = vector.shape_cast %17 : vector<128xf32> to vector<128x1xf32>
    %19 = math.sqrt %18 : vector<128x1xf32>
    %c0_6 = arith.constant 0 : index
    %c0_7 = arith.constant 0 : index
    %20 = memref.load %arg3[%c0_6, %c0_7] : memref<1x1xf32, #tpu.memory_space<smem>>
    %21 = vector.shape_cast %19 : vector<128x1xf32> to vector<1x128x1xf32>
    %cst_8 = arith.constant dense<0.000000e+00> : vector<1xf32>
    %22 = vector.multi_reduction <add>, %21, %cst_8 [1, 2] : vector<1x128x1xf32> to vector<1xf32>
    %23 = vector.shape_cast %22 : vector<1xf32> to vector<1x1x1xf32>
    %24 = vector.extract %23[0, 0, 0] : f32 from vector<1x1x1xf32>
    %25 = arith.addf %20, %24 : f32
    %c0_9 = arith.constant 0 : index
    %c0_10 = arith.constant 0 : index
    %26 = memref.load %arg3[%c0_9, %c0_10] : memref<1x1xf32, #tpu.memory_space<smem>>
    memref.store %25, %arg3[%c0_9, %c0_10] : memref<1x1xf32, #tpu.memory_space<smem>>
    %c0_i32_11 = arith.constant 0 : i32
    %27 = arith.cmpi eq, %arg0, %c0_i32_11 : i32
    %28 = arith.extui %27 : i1 to i32
    %c0_i32_12 = arith.constant 0 : i32
    %29 = arith.cmpi ne, %28, %c0_i32_12 : i32
    scf.if %29 {
      %c0_13 = arith.constant 0 : index
      %c0_14 = arith.constant 0 : index
      %30 = memref.load %arg3[%c0_13, %c0_14] : memref<1x1xf32, #tpu.memory_space<smem>>
      %cst_15 = arith.constant 1.250000e-01 : f32
      %31 = arith.mulf %30, %cst_15 : f32
      %c0_16 = arith.constant 0 : index
      %c0_17 = arith.constant 0 : index
      %32 = memref.load %arg3[%c0_16, %c0_17] : memref<1x1xf32, #tpu.memory_space<smem>>
      memref.store %31, %arg3[%c0_16, %c0_17] : memref<1x1xf32, #tpu.memory_space<smem>>
    } else {
    }
    return
  }
  func.func @transform_0(%arg0: i32) -> (i32, i32) {
    %c0_i32 = arith.constant 0 : i32
    %c0_i32_0 = arith.constant 0 : i32
    return %arg0, %c0_i32 : i32, i32
  }
  func.func @transform_1(%arg0: i32) -> (i32, i32) {
    %c0_i32 = arith.constant 0 : i32
    %c0_i32_0 = arith.constant 0 : i32
    return %arg0, %c0_i32 : i32, i32
  }
  func.func @transform_2(%arg0: i32) -> (i32, i32) {
    %c0_i32 = arith.constant 0 : i32
    %c0_i32_0 = arith.constant 0 : i32
    %c0_i32_1 = arith.constant 0 : i32
    return %c0_i32, %c0_i32_0 : i32, i32
  }
}

</mosaic_0001>

<llo_original>
// kernel: tpu_custom_call.1
$region0: #{tpu_custom_call.1}
  #allocation0 [shape = 'u32[]', space=smem, size = 0x4, offset = 0x4, fixed_abs, tag = 'smem constant byte address 0x4 - core index']
  #allocation1 [shape = 'u32[144,128]{1,0:T(1,128)}', space=vmem, size = 0x12000, scoped, tag = 'internal scratch']
  %s0 = inlined_call_operand.vmem [shape: f32[128,32], index: 0, kind: input, shape index: {}]
  %s1 = inlined_call_operand.vmem [shape: f32[128,32], index: 1, kind: input, shape index: {}]
  %s2 = inlined_call_operand.hbm [shape: f32[1,1], index: 2, kind: output, shape index: {}]
  %s3 = sld [smem:[#allocation0]]
  $region26: #{tpu_custom_call.1} parent=0
    _
  %s5 = ssub.s32 1, %s3
  %s6 = scalar_select 0, %s5, %s3
  $region1: #{tpu_custom_call.1} parent=0
    #allocation2 [shape = 'u8[512]{0}', space=smem, size = 0x200, scoped, tag = 'output window, operand 0, single buffered']
    #allocation3 [shape = 's32[1]{0}', space=sflag, size = 0x4, scoped, tag = 'scoped memory for tpu_custom_call.1']
    %7 = vsyncpa [#allocation3], 0
    // Predicated region
    $region2: #{tpu_custom_call.1} parent=1 // pred_check
      _
    $region3: #{tpu_custom_call.1} parent=1 // pred_check_branch
      %9 = sbr.rel (0) target = $region5
    $region4: #{tpu_custom_call.1} parent=1 // pred_region
      _
    $region5: #{tpu_custom_call.1} parent=1 // pred_fallthru
      _
    // Predicated region
    $region6: #{tpu_custom_call.1} parent=1 // pred_check
      _
    $region7: #{tpu_custom_call.1} parent=1 // pred_check_branch
      %11 = sbr.rel (0) target = $region9
    $region8: #{tpu_custom_call.1} parent=1 // pred_region
      _
    $region9: #{tpu_custom_call.1} parent=1 // pred_fallthru
      _
    %p12 = scmp.eq.s32.totalorder 0, 0
    // Predicated region
    $region10: #{tpu_custom_call.1} parent=1 // pred_check
      %p13 = pneg %p12
    $region11: #{tpu_custom_call.1} parent=1 // pred_check_branch
      %15 = sbr.rel (%p13) target = $region13
    $region12: #{tpu_custom_call.1} parent=1 // pred_region
      %s16 = scalar_lea.smem [#allocation2], 0
      %17 = sst [smem:[%s16]] 0.0
    $region13: #{tpu_custom_call.1} parent=1 // pred_fallthru
      _
    %v18 = vld [vmem:[%s0] sm:$0xff]
    %v19 = vld [vmem:[%s0 + $0x8] sm:$0xff]
    %v20 = vld [vmem:[%s0 + $0x10] sm:$0xff]
    %v21 = vld [vmem:[%s0 + $0x18] sm:$0xff]
    %v22 = vld [vmem:[%s0 + $0x20] sm:$0xff]
    %v23 = vld [vmem:[%s0 + $0x28] sm:$0xff]
    %v24 = vld [vmem:[%s0 + $0x30] sm:$0xff]
    %v25 = vld [vmem:[%s0 + $0x38] sm:$0xff]
    %v26 = vld [vmem:[%s0 + $0x40] sm:$0xff]
    %v27 = vld [vmem:[%s0 + $0x48] sm:$0xff]
    %v28 = vld [vmem:[%s0 + $0x50] sm:$0xff]
    %v29 = vld [vmem:[%s0 + $0x58] sm:$0xff]
    %v30 = vld [vmem:[%s0 + $0x60] sm:$0xff]
    %v31 = vld [vmem:[%s0 + $0x68] sm:$0xff]
    %v32 = vld [vmem:[%s0 + $0x70] sm:$0xff]
    %v33 = vld [vmem:[%s0 + $0x78] sm:$0xff]
    %v34 = vld [vmem:[%s1] sm:$0xff]
    %v35 = vld [vmem:[%s1 + $0x8] sm:$0xff]
    %v36 = vld [vmem:[%s1 + $0x10] sm:$0xff]
    %v37 = vld [vmem:[%s1 + $0x18] sm:$0xff]
    %v38 = vld [vmem:[%s1 + $0x20] sm:$0xff]
    %v39 = vld [vmem:[%s1 + $0x28] sm:$0xff]
    %v40 = vld [vmem:[%s1 + $0x30] sm:$0xff]
    %v41 = vld [vmem:[%s1 + $0x38] sm:$0xff]
    %v42 = vld [vmem:[%s1 + $0x40] sm:$0xff]
    %v43 = vld [vmem:[%s1 + $0x48] sm:$0xff]
    %v44 = vld [vmem:[%s1 + $0x50] sm:$0xff]
    %v45 = vld [vmem:[%s1 + $0x58] sm:$0xff]
    %v46 = vld [vmem:[%s1 + $0x60] sm:$0xff]
    %v47 = vld [vmem:[%s1 + $0x68] sm:$0xff]
    %v48 = vld [vmem:[%s1 + $0x70] sm:$0xff]
    %v49 = vld [vmem:[%s1 + $0x78] sm:$0xff]
    %v50 = vsub.f32 %v18, %v34
    %v51 = vsub.f32 %v19, %v35
    %v52 = vsub.f32 %v20, %v36
    %v53 = vsub.f32 %v21, %v37
    %v54 = vsub.f32 %v22, %v38
    %v55 = vsub.f32 %v23, %v39
    %v56 = vsub.f32 %v24, %v40
    %v57 = vsub.f32 %v25, %v41
    %v58 = vsub.f32 %v26, %v42
    %v59 = vsub.f32 %v27, %v43
    %v60 = vsub.f32 %v28, %v44
    %v61 = vsub.f32 %v29, %v45
    %v62 = vsub.f32 %v30, %v46
    %v63 = vsub.f32 %v31, %v47
    %v64 = vsub.f32 %v32, %v48
    %v65 = vsub.f32 %v33, %v49
    %v66 = vadd.f32 %v50, 1e-06
    %v67 = vadd.f32 %v51, 1e-06
    %v68 = vadd.f32 %v52, 1e-06
    %v69 = vadd.f32 %v53, 1e-06
    %v70 = vadd.f32 %v54, 1e-06
    %v71 = vadd.f32 %v55, 1e-06
    %v72 = vadd.f32 %v56, 1e-06
    %v73 = vadd.f32 %v57, 1e-06
    %v74 = vadd.f32 %v58, 1e-06
    %v75 = vadd.f32 %v59, 1e-06
    %v76 = vadd.f32 %v60, 1e-06
    %v77 = vadd.f32 %v61, 1e-06
    %v78 = vadd.f32 %v62, 1e-06
    %v79 = vadd.f32 %v63, 1e-06
    %v80 = vadd.f32 %v64, 1e-06
    %v81 = vadd.f32 %v65, 1e-06
    %s82 = smul.u32 0, 128
    %v83 = vlaneseq
    %v84 = vshrl.u32 %v83, 7
    %v85 = vadd.s32 %v84, 8
    %v86 = vadd.s32 %v84, 16
    %v87 = vadd.s32 %v84, 24
    %v88 = vadd.s32 %v84, 32
    %v89 = vadd.s32 %v84, 40
    %v90 = vadd.s32 %v84, 48
    %v91 = vadd.s32 %v84, 56
    %v92 = vadd.s32 %v84, 64
    %v93 = vadd.s32 %v84, 72
    %v94 = vadd.s32 %v84, 80
    %v95 = vadd.s32 %v84, 88
    %v96 = vadd.s32 %v84, 96
    %v97 = vadd.s32 %v84, 104
    %v98 = vadd.s32 %v84, 112
    %v99 = vadd.s32 %v84, 120
    %v100 = vstv %s82
    %v101 = vadd.s32 %v100, %v84
    %v102 = vadd.s32 %v100, %v85
    %v103 = vadd.s32 %v100, %v86
    %v104 = vadd.s32 %v100, %v87
    %v105 = vadd.s32 %v100, %v88
    %v106 = vadd.s32 %v100, %v89
    %v107 = vadd.s32 %v100, %v90
    %v108 = vadd.s32 %v100, %v91
    %v109 = vadd.s32 %v100, %v92
    %v110 = vadd.s32 %v100, %v93
    %v111 = vadd.s32 %v100, %v94
    %v112 = vadd.s32 %v100, %v95
    %v113 = vadd.s32 %v100, %v96
    %v114 = vadd.s32 %v100, %v97
    %v115 = vadd.s32 %v100, %v98
    %v116 = vadd.s32 %v100, %v99
    %vm117 = vcmp.lt.s32.totalorder %v101, 8
    %vm118 = vcmp.lt.s32.totalorder %v102, 8
    %vm119 = vcmp.lt.s32.totalorder %v103, 8
    %vm120 = vcmp.lt.s32.totalorder %v104, 8
    %vm121 = vcmp.lt.s32.totalorder %v105, 8
    %vm122 = vcmp.lt.s32.totalorder %v106, 8
    %vm123 = vcmp.lt.s32.totalorder %v107, 8
    %vm124 = vcmp.lt.s32.totalorder %v108, 8
    %vm125 = vcmp.lt.s32.totalorder %v109, 8
    %vm126 = vcmp.lt.s32.totalorder %v110, 8
    %vm127 = vcmp.lt.s32.totalorder %v111, 8
    %vm128 = vcmp.lt.s32.totalorder %v112, 8
    %vm129 = vcmp.lt.s32.totalorder %v113, 8
    %vm130 = vcmp.lt.s32.totalorder %v114, 8
    %vm131 = vcmp.lt.s32.totalorder %v115, 8
    %vm132 = vcmp.lt.s32.totalorder %v116, 8
    %v133 = vsel %vm117, %v66, 0.0
    %v134 = vsel %vm118, %v67, 0.0
    %v135 = vsel %vm119, %v68, 0.0
    %v136 = vsel %vm120, %v69, 0.0
    %v137 = vsel %vm121, %v70, 0.0
    %v138 = vsel %vm122, %v71, 0.0
    %v139 = vsel %vm123, %v72, 0.0
    %v140 = vsel %vm124, %v73, 0.0
    %v141 = vsel %vm125, %v74, 0.0
    %v142 = vsel %vm126, %v75, 0.0
    %v143 = vsel %vm127, %v76, 0.0
    %v144 = vsel %vm128, %v77, 0.0
    %v145 = vsel %vm129, %v78, 0.0
    %v146 = vsel %vm130, %v79, 0.0
    %v147 = vsel %vm131, %v80, 0.0
    %v148 = vsel %vm132, %v81, 0.0
    %v149 = vmul.f32 %v133, %v133
    %v150 = vmul.f32 %v134, %v134
    %v151 = vmul.f32 %v135, %v135
    %v152 = vmul.f32 %v136, %v136
    %v153 = vmul.f32 %v137, %v137
    %v154 = vmul.f32 %v138, %v138
    %v155 = vmul.f32 %v139, %v139
    %v156 = vmul.f32 %v140, %v140
    %v157 = vmul.f32 %v141, %v141
    %v158 = vmul.f32 %v142, %v142
    %v159 = vmul.f32 %v143, %v143
    %v160 = vmul.f32 %v144, %v144
    %v161 = vmul.f32 %v145, %v145
    %v162 = vmul.f32 %v146, %v146
    %v163 = vmul.f32 %v147, %v147
    %v164 = vmul.f32 %v148, %v148
    %vm165 = vcmask 261120
    %v166 = vsel %vm165, %v149, 0.0
    %167 = vadd.xlane.f32.xlu0 %v166
    %v168 = vpop.xlane.xlu0 %167
    %v169 = vsel %vm165, %v150, 0.0
    %170 = vadd.xlane.f32.xlu0 %v169
    %v171 = vpop.xlane.xlu0 %170
    %v172 = vsel %vm165, %v151, 0.0
    %173 = vadd.xlane.f32.xlu0 %v172
    %v174 = vpop.xlane.xlu0 %173
    %v175 = vsel %vm165, %v152, 0.0
    %176 = vadd.xlane.f32.xlu0 %v175
    %v177 = vpop.xlane.xlu0 %176
    %v178 = vsel %vm165, %v153, 0.0
    %179 = vadd.xlane.f32.xlu0 %v178
    %v180 = vpop.xlane.xlu0 %179
    %v181 = vsel %vm165, %v154, 0.0
    %182 = vadd.xlane.f32.xlu0 %v181
    %v183 = vpop.xlane.xlu0 %182
    %v184 = vsel %vm165, %v155, 0.0
    %185 = vadd.xlane.f32.xlu0 %v184
    %v186 = vpop.xlane.xlu0 %185
    %v187 = vsel %vm165, %v156, 0.0
    %188 = vadd.xlane.f32.xlu0 %v187
    %v189 = vpop.xlane.xlu0 %188
    %v190 = vsel %vm165, %v157, 0.0
    %191 = vadd.xlane.f32.xlu0 %v190
    %v192 = vpop.xlane.xlu0 %191
    %v193 = vsel %vm165, %v158, 0.0
    %194 = vadd.xlane.f32.xlu0 %v193
    %v195 = vpop.xlane.xlu0 %194
    %v196 = vsel %vm165, %v159, 0.0
    %197 = vadd.xlane.f32.xlu0 %v196
    %v198 = vpop.xlane.xlu0 %197
    %v199 = vsel %vm165, %v160, 0.0
    %200 = vadd.xlane.f32.xlu0 %v199
    %v201 = vpop.xlane.xlu0 %200
    %v202 = vsel %vm165, %v161, 0.0
    %203 = vadd.xlane.f32.xlu0 %v202
    %v204 = vpop.xlane.xlu0 %203
    %v205 = vsel %vm165, %v162, 0.0
    %206 = vadd.xlane.f32.xlu0 %v205
    %v207 = vpop.xlane.xlu0 %206
    %v208 = vsel %vm165, %v163, 0.0
    %209 = vadd.xlane.f32.xlu0 %v208
    %v210 = vpop.xlane.xlu0 %209
    %v211 = vsel %vm165, %v164, 0.0
    %212 = vadd.xlane.f32.xlu0 %v211
    %v213 = vpop.xlane.xlu0 %212
    %v214 = vrsqrt.pop %v168
    %v215 = vmul.f32 %v168, %v214
    %vm216 = vcmp.eq.f32.partialorder %v168, inf
    %v217 = vsel %vm216, %v168, %v215
    %vm218 = vcmp.eq.f32.partialorder %v168, 0.0
    %v219 = vand.u32 %v168, 2147483648
    %v220 = vsel %vm218, %v219, %v217
    %v221 = vrsqrt.pop %v171
    %v222 = vmul.f32 %v171, %v221
    %vm223 = vcmp.eq.f32.partialorder %v171, inf
    %v224 = vsel %vm223, %v171, %v222
    %vm225 = vcmp.eq.f32.partialorder %v171, 0.0
    %v226 = vand.u32 %v171, 2147483648
    %v227 = vsel %vm225, %v226, %v224
    %v228 = vrsqrt.pop %v174
    %v229 = vmul.f32 %v174, %v228
    %vm230 = vcmp.eq.f32.partialorder %v174, inf
    %v231 = vsel %vm230, %v174, %v229
    %vm232 = vcmp.eq.f32.partialorder %v174, 0.0
    %v233 = vand.u32 %v174, 2147483648
    %v234 = vsel %vm232, %v233, %v231
    %v235 = vrsqrt.pop %v177
    %v236 = vmul.f32 %v177, %v235
    %vm237 = vcmp.eq.f32.partialorder %v177, inf
    %v238 = vsel %vm237, %v177, %v236
    %vm239 = vcmp.eq.f32.partialorder %v177, 0.0
    %v240 = vand.u32 %v177, 2147483648
    %v241 = vsel %vm239, %v240, %v238
    %v242 = vrsqrt.pop %v180
    %v243 = vmul.f32 %v180, %v242
    %vm244 = vcmp.eq.f32.partialorder %v180, inf
    %v245 = vsel %vm244, %v180, %v243
    %vm246 = vcmp.eq.f32.partialorder %v180, 0.0
    %v247 = vand.u32 %v180, 2147483648
    %v248 = vsel %vm246, %v247, %v245
    %v249 = vrsqrt.pop %v183
    %v250 = vmul.f32 %v183, %v249
    %vm251 = vcmp.eq.f32.partialorder %v183, inf
    %v252 = vsel %vm251, %v183, %v250
    %vm253 = vcmp.eq.f32.partialorder %v183, 0.0
    %v254 = vand.u32 %v183, 2147483648
    %v255 = vsel %vm253, %v254, %v252
    %v256 = vrsqrt.pop %v186
    %v257 = vmul.f32 %v186, %v256
    %vm258 = vcmp.eq.f32.partialorder %v186, inf
    %v259 = vsel %vm258, %v186, %v257
    %vm260 = vcmp.eq.f32.partialorder %v186, 0.0
    %v261 = vand.u32 %v186, 2147483648
    %v262 = vsel %vm260, %v261, %v259
    %v263 = vrsqrt.pop %v189
    %v264 = vmul.f32 %v189, %v263
    %vm265 = vcmp.eq.f32.partialorder %v189, inf
    %v266 = vsel %vm265, %v189, %v264
    %vm267 = vcmp.eq.f32.partialorder %v189, 0.0
    %v268 = vand.u32 %v189, 2147483648
    %v269 = vsel %vm267, %v268, %v266
    %v270 = vrsqrt.pop %v192
    %v271 = vmul.f32 %v192, %v270
    %vm272 = vcmp.eq.f32.partialorder %v192, inf
    %v273 = vsel %vm272, %v192, %v271
    %vm274 = vcmp.eq.f32.partialorder %v192, 0.0
    %v275 = vand.u32 %v192, 2147483648
    %v276 = vsel %vm274, %v275, %v273
    %v277 = vrsqrt.pop %v195
    %v278 = vmul.f32 %v195, %v277
    %vm279 = vcmp.eq.f32.partialorder %v195, inf
    %v280 = vsel %vm279, %v195, %v278
    %vm281 = vcmp.eq.f32.partialorder %v195, 0.0
    %v282 = vand.u32 %v195, 2147483648
    %v283 = vsel %vm281, %v282, %v280
    %v284 = vrsqrt.pop %v198
    %v285 = vmul.f32 %v198, %v284
    %vm286 = vcmp.eq.f32.partialorder %v198, inf
    %v287 = vsel %vm286, %v198, %v285
    %vm288 = vcmp.eq.f32.partialorder %v198, 0.0
    %v289 = vand.u32 %v198, 2147483648
    %v290 = vsel %vm288, %v289, %v287
    %v291 = vrsqrt.pop %v201
    %v292 = vmul.f32 %v201, %v291
    %vm293 = vcmp.eq.f32.partialorder %v201, inf
    %v294 = vsel %vm293, %v201, %v292
    %vm295 = vcmp.eq.f32.partialorder %v201, 0.0
    %v296 = vand.u32 %v201, 2147483648
    %v297 = vsel %vm295, %v296, %v294
    %v298 = vrsqrt.pop %v204
    %v299 = vmul.f32 %v204, %v298
    %vm300 = vcmp.eq.f32.partialorder %v204, inf
    %v301 = vsel %vm300, %v204, %v299
    %vm302 = vcmp.eq.f32.partialorder %v204, 0.0
    %v303 = vand.u32 %v204, 2147483648
    %v304 = vsel %vm302, %v303, %v301
    %v305 = vrsqrt.pop %v207
    %v306 = vmul.f32 %v207, %v305
    %vm307 = vcmp.eq.f32.partialorder %v207, inf
    %v308 = vsel %vm307, %v207, %v306
    %vm309 = vcmp.eq.f32.partialorder %v207, 0.0
    %v310 = vand.u32 %v207, 2147483648
    %v311 = vsel %vm309, %v310, %v308
    %v312 = vrsqrt.pop %v210
    %v313 = vmul.f32 %v210, %v312
    %vm314 = vcmp.eq.f32.partialorder %v210, inf
    %v315 = vsel %vm314, %v210, %v313
    %vm316 = vcmp.eq.f32.partialorder %v210, 0.0
    %v317 = vand.u32 %v210, 2147483648
    %v318 = vsel %vm316, %v317, %v315
    %v319 = vrsqrt.pop %v213
    %v320 = vmul.f32 %v213, %v319
    %vm321 = vcmp.eq.f32.partialorder %v213, inf
    %v322 = vsel %vm321, %v213, %v320
    %vm323 = vcmp.eq.f32.partialorder %v213, 0.0
    %v324 = vand.u32 %v213, 2147483648
    %v325 = vsel %vm323, %v324, %v322
    %s326 = sld [smem:[#allocation2]]
    %vm327 = vcmask 7168
    %v328 = vsel %vm327, %v220, 0.0
    %v329 = vsel %vm327, %v227, 0.0
    %v330 = vadd.f32 %v328, %v329
    %v331 = vsel %vm327, %v234, 0.0
    %v332 = vadd.f32 %v330, %v331
    %v333 = vsel %vm327, %v241, 0.0
    %v334 = vadd.f32 %v332, %v333
    %v335 = vsel %vm327, %v248, 0.0
    %v336 = vadd.f32 %v334, %v335
    %v337 = vsel %vm327, %v255, 0.0
    %v338 = vadd.f32 %v336, %v337
    %v339 = vsel %vm327, %v262, 0.0
    %v340 = vadd.f32 %v338, %v339
    %v341 = vsel %vm327, %v269, 0.0
    %v342 = vadd.f32 %v340, %v341
    %v343 = vsel %vm327, %v276, 0.0
    %v344 = vadd.f32 %v342, %v343
    %v345 = vsel %vm327, %v283, 0.0
    %v346 = vadd.f32 %v344, %v345
    %v347 = vsel %vm327, %v290, 0.0
    %v348 = vadd.f32 %v346, %v347
    %v349 = vsel %vm327, %v297, 0.0
    %v350 = vadd.f32 %v348, %v349
    %v351 = vsel %vm327, %v304, 0.0
    %v352 = vadd.f32 %v350, %v351
    %v353 = vsel %vm327, %v311, 0.0
    %v354 = vadd.f32 %v352, %v353
    %v355 = vsel %vm327, %v318, 0.0
    %v356 = vadd.f32 %v354, %v355
    %v357 = vsel %vm327, %v325, 0.0
    %v358 = vadd.f32 %v356, %v357
    %359 = vadd.xlane.f32.xlu0 %v358
    %v360 = vpop.xlane.xlu0 %359
    %v361 = vrot.slane %v360, 4
    %v362 = vadd.f32 %v360, %v361
    %v363 = vrot.slane %v362, 2
    %v364 = vadd.f32 %v362, %v363
    %v365 = vrot.slane %v364, 1
    %v366 = vadd.f32 %v364, %v365
    %s367 = vtos %v366
    %s368 = sadd.f32 %s326, %s367
    %s369 = scalar_lea.smem [#allocation2], 0
    %370 = sst [smem:[%s369]] %s368
    // Predicated region
    $region14: #{tpu_custom_call.1} parent=1 // pred_check
      %p371 = pneg %p12
    $region15: #{tpu_custom_call.1} parent=1 // pred_check_branch
      %373 = sbr.rel (%p371) target = $region17
    $region16: #{tpu_custom_call.1} parent=1 // pred_region
      %s374 = sld [smem:[#allocation2]]
      %s375 = smul.f32 %s374, 0.125
      %376 = sst [smem:[%s369]] %s375
    $region17: #{tpu_custom_call.1} parent=1 // pred_fallthru
      _
    // Predicated region
    $region18: #{tpu_custom_call.1} parent=1 // pred_check
      _
    $region19: #{tpu_custom_call.1} parent=1 // pred_check_branch
      %378 = sbr.rel (0) target = $region21
    $region20: #{tpu_custom_call.1} parent=1 // pred_region
      %s380 = ssub.s32 16, 16
      %381 = vsyncadd [#allocation3], %s380
      %384 = dma.smem_to_hbm [#allocation2], 16, %s2, [#allocation3]
    $region21: #{tpu_custom_call.1} parent=1 // pred_fallthru
      _
    // Predicated region
    $region22: #{tpu_custom_call.1} parent=1 // pred_check
      _
    $region23: #{tpu_custom_call.1} parent=1 // pred_check_branch
      %386 = sbr.rel (0) target = $region25
    $region24: #{tpu_custom_call.1} parent=1 // pred_region
      %387 = dma.done [#allocation3], 16
    $region25: #{tpu_custom_call.1} parent=1 // pred_fallthru
      _
    %388 = sfence
    %389 = vsyncpa [#allocation3], 1

</llo_original>
